<compile_context>
chip_gen: v6e
topology: v6e:2x2x1
jax: 0.10.0
libtpu: 0.0.40
codegen_flags: <defaults>
</compile_context>

<pallas_src>
import functools

import jax
import jax.numpy as jnp
from jax import lax
from jax.experimental import pallas as pl
from jax.experimental.pallas import tpu as pltpu


def _apply_act(pre, act):
    if act == "tanh":
        return jnp.tanh(pre)
    if act == "relu":
        return jnp.maximum(pre, 0.0)
    if act == "ident":
        return pre
    raise NotImplementedError(act)


# ------------------------- parameter preparation (run once) -------------------------

def make_params(wx_w, bx, wy_w, by, compute_dtype=jnp.float32):
    """One-time prep: transpose weights to [in, out], cast, fuse the two biases."""
    wx_t = jnp.asarray(wx_w).T.astype(compute_dtype)               # [n_inp, H]
    wy_t = jnp.asarray(wy_w).T.astype(compute_dtype)               # [H, H]
    bias = (jnp.asarray(bx) + jnp.asarray(by)).astype(jnp.float32).reshape(1, -1)
    return {"wx_t": wx_t, "wy_t": wy_t, "bias": bias}


# If n_inp is at most this, the input projection is done as VPU broadcast-FMAs
# (a K=n_inp MXU contraction would waste almost the whole systolic array).
_VPU_NINP_MAX = 16


# ------------------------------- single-step kernel ---------------------------------

def _cell_step_kernel(x_ref, h_ref, wx_ref, wy_ref, b_ref, o_ref, *, act, n_inp):
    # Recurrent part on the MXU (K = H, clean), f32 accumulation.
    pre = b_ref[...].astype(jnp.float32) + jnp.dot(
        h_ref[...].astype(wy_ref.dtype), wy_ref[...],
        preferred_element_type=jnp.float32)
    if n_inp > _VPU_NINP_MAX:
        pre = pre + jnp.dot(x_ref[...].astype(wx_ref.dtype), wx_ref[...],
                            preferred_element_type=jnp.float32)
    else:
        # Tiny-K input projection on the VPU: n_inp broadcast-multiply-adds.
        x = x_ref[...].astype(jnp.float32)
        for i in range(n_inp):
            pre = pre + x[:, i:i + 1] * wx_ref[i:i + 1, :].astype(jnp.float32)
    o_ref[...] = _apply_act(pre, act).astype(o_ref.dtype)


def rnn_cell_step(x, hy, params, act="tanh"):
    """Exact equivalent of RNN_Cell.forward(x, hy) for one step."""
    B, n_inp = x.shape
    H = hy.shape[-1]
    wx_t, wy_t, bias = params["wx_t"], params["wy_t"], params["bias"]

    full = lambda shape: pl.BlockSpec(shape, lambda: (0,) * len(shape))
    return pl.pallas_call(
        functools.partial(_cell_step_kernel, act=act, n_inp=n_inp),
        out_shape=jax.ShapeDtypeStruct((B, H), jnp.float32),
        grid=(),
        in_specs=[full(x.shape), full(hy.shape), full(wx_t.shape),
                  full(wy_t.shape), full(bias.shape)],
        out_specs=full((B, H)),
    )(x.astype(jnp.float32), hy.astype(jnp.float32), wx_t, wy_t, bias)


# ----------------------------- fused-sequence kernel --------------------------------

def _rnn_seq_kernel(x_ref, h0_ref, wx_ref, wy_ref, b_ref, o_ref, h_scr,
                    *, act, tq, n_inp):
    # New batch chunk (or very first chunk): (re)load the initial hidden state.
    @pl.when(pl.program_id(1) == 0)
    def _():
        h_scr[...] = h0_ref[...].astype(jnp.float32)

    bias = b_ref[...].astype(jnp.float32)                          # (1, H)
    # Hoisted once per chunk: Wx rows for the VPU input projection.  Kept in f32 so
    # the VPU adds work on all generations (v5e has no bf16 VALU).
    wx_rows = [wx_ref[i:i + 1, :].astype(jnp.float32) for i in range(n_inp)]

    def step(t, h):
        # Fused input projection: U_t = bias + sum_i x[t,:,i] * Wx^T[i]  (VPU, not MXU).
        x_t = x_ref[t].astype(jnp.float32)                         # (BB, n_inp)
        u = bias
        for i in range(n_inp):
            u = u + x_t[:, i:i + 1] * wx_rows[i]
        # Recurrence on the MXU with f32 accumulation: hy <- act(U_t + hy @ Wy^T).
        pre = u + jnp.dot(h.astype(wy_ref.dtype), wy_ref[...],
                          preferred_element_type=jnp.float32)
        h_new = _apply_act(pre, act)
        # VMEM store only; the HBM writeback DMA happens once per TQ-chunk.
        o_ref[t] = h_new.astype(o_ref.dtype)
        return h_new

    h_scr[...] = lax.fori_loop(0, tq, step, h_scr[...], unroll=True)


def rnn_cell_sequence(x_seq, h0, params, act="tanh", tq=16, batch_block=None):
    """Apply the cell over a [T, B, n_inp] sequence with a single pallas_call.

    Returns all per-step hidden states, shape [T, B, H] (out[-1] is the final hy).

    tq          : time-chunk size (recurrence steps per grid iteration).
    batch_block : optional batch-chunk size (must divide B and keep blocks >= 8 rows);
                  with >1 chunks the leading grid axis is 'parallel' so v7x's second
                  TensorCore runs an independent batch half of the recurrence.
    """
    T, B, n_inp = x_seq.shape
    H = h0.shape[-1]
    wx_t, wy_t, bias = params["wx_t"], params["wy_t"], params["bias"]

    # Time chunking (pad T to a multiple of tq; padded steps produce garbage that is
    # sliced off and cannot affect earlier outputs).
    tq = max(1, min(int(tq), T))
    t_pad = pl.cdiv(T, tq) * tq
    x_in = x_seq.astype(jnp.float32)
    if t_pad != T:
        x_in = jnp.pad(x_in, ((0, t_pad - T), (0, 0), (0, 0)))

    bb = B if batch_block is None else int(batch_block)
    if bb <= 0 or B % bb != 0 or bb % 8 != 0:
        bb = B
    nb, nt = B // bb, t_pad // tq

    out = pl.pallas_call(
        functools.partial(_rnn_seq_kernel, act=act, tq=tq, n_inp=n_inp),
        out_shape=jax.ShapeDtypeStruct((t_pad, B, H), jnp.float32),
        grid=(nb, nt),
        in_specs=[
            pl.BlockSpec((tq, bb, n_inp), lambda b, t: (t, b, 0)),  # x chunk (tiny) streamed
            pl.BlockSpec((bb, H), lambda b, t: (b, 0)),             # h0 for this batch chunk
            pl.BlockSpec((n_inp, H), lambda b, t: (0, 0)),          # Wx^T, VMEM-resident
            pl.BlockSpec((H, H), lambda b, t: (0, 0)),              # Wy^T, VMEM-resident
            pl.BlockSpec((1, H), lambda b, t: (0, 0)),              # fused bias
        ],
        out_specs=pl.BlockSpec((tq, bb, H), lambda b, t: (t, b, 0)),
        scratch_shapes=[pltpu.VMEM((bb, H), jnp.float32)],          # hy carried across chunks
        compiler_params=pltpu.CompilerParams(
            # Batch chunks are independent ('parallel', fills v7x's 2nd TC when nb>1);
            # the time axis is a true recurrence ('arbitrary').
            dimension_semantics=("parallel", "arbitrary"),
            # TODO(synk): for large H / TQ, pass an explicit vmem_limit_bytes derived
            # from the per-generation scoped VMEM (v5e 16 MiB, v6e/v7x 32 MiB default).
        ),
    )(x_in, h0.astype(jnp.float32), wx_t, wy_t, bias)

    return out[:T] if t_pad != T else out


if __name__ == "__main__":
    # Small shapes consistent with the module: n_inp=4, n_hid=32, n_ch=4 -> H=128.
    # T=12 with tq=8 exercises both the chunked grid (2 chunks) and the padding path.
    B, n_inp, n_hid, n_ch, T = 8, 4, 32, 4, 12
    H = n_hid * n_ch
    act = "tanh"
    TQ = 8

    key = jax.random.PRNGKey(0)
    kx, kh, kwx, kbx, kwy, kby = jax.random.split(key, 6)

    x_seq = jax.random.normal(kx, (T, B, n_inp), dtype=jnp.float32)
    h0 = jax.random.normal(kh, (B, H), dtype=jnp.float32)

    # Parameters mirroring nn.Linear init.  init='rand' so the recurrent matmul is
    # exercised non-trivially; init='eye' (Wy=I, by=0) is handled identically.
    bx_bound = 1.0 / jnp.sqrt(jnp.float32(n_inp))
    hy_bound = 1.0 / jnp.sqrt(jnp.float32(H))
    wx_w = jax.random.uniform(kwx, (H, n_inp), jnp.float32, -bx_bound, bx_bound)
    bx = jax.random.uniform(kbx, (H,), jnp.float32, -bx_bound, bx_bound)
    wy_w = jax.random.uniform(kwy, (H, H), jnp.float32, -hy_bound, hy_bound)
    by = jax.random.uniform(kby, (H,), jnp.float32, -hy_bound, hy_bound)

    # Plain-JAX reference (same semantics as the PyTorch forward).
    hp = jax.lax.Precision.HIGHEST

    def ref_step(x, h):
        pre = (jnp.matmul(x, wx_w.T, precision=hp) + bx
               + jnp.matmul(h, wy_w.T, precision=hp) + by)
        return jnp.tanh(pre)

    ref_states = []
    h = h0
    for t in range(T):
        h = ref_step(x_seq[t], h)
        ref_states.append(h)
    ref_seq = jnp.stack(ref_states, axis=0)

    # --- f32 path: single step (== module.forward) and fused chunked sequence. ---
    params_f32 = make_params(wx_w, bx, wy_w, by, compute_dtype=jnp.float32)

    out_step = jax.block_until_ready(rnn_cell_step(x_seq[0], h0, params_f32, act=act))
    assert out_step.shape == (B, H)
    assert jnp.allclose(out_step, ref_seq[0], atol=1e-3, rtol=1e-3)

    out_seq = jax.block_until_ready(
        rnn_cell_sequence(x_seq, h0, params_f32, act=act, tq=TQ))
    assert out_seq.shape == (T, B, H)
    assert jnp.allclose(out_seq, ref_seq, atol=1e-3, rtol=1e-3)

    # --- bf16-weight path (f32 accumulation, f32 add/tanh): halves the resident
    #     Wy/Wx VMEM and feeds the MXU at full rate on all generations.  Checked
    #     loosely against the f32 reference (error compounds through the recurrence).
    params_bf16 = make_params(wx_w, bx, wy_w, by, compute_dtype=jnp.bfloat16)
    out_seq_bf16 = jax.block_until_ready(
        rnn_cell_sequence(x_seq, h0, params_bf16, act=act, tq=TQ))
    assert out_seq_bf16.shape == (T, B, H)
    assert jnp.allclose(out_seq_bf16, ref_seq, atol=1e-1, rtol=1e-1)

    print("KERNEL_OK")
</pallas_src>

<mosaic_0001>
module attributes {stable_mosaic.version = 11 : i64} {
  func.func @_cell_step_kernel(%arg0: memref<8x4xf32, #tpu.memory_space<vmem>>, %arg1: memref<8x128xf32, #tpu.memory_space<vmem>>, %arg2: memref<4x128xf32, #tpu.memory_space<vmem>>, %arg3: memref<128x128xf32, #tpu.memory_space<vmem>>, %arg4: memref<1x128xf32, #tpu.memory_space<vmem>>, %arg5: memref<8x128xf32, #tpu.memory_space<vmem>>) attributes {dimension_semantics = [], scalar_prefetch = 0 : i64, scratch_operands = 0 : i64, tpu.core_type = #tpu.core_type<tc>} {
    %c0 = arith.constant 0 : index
    %c0_0 = arith.constant 0 : index
    %0 = vector.load %arg4[%c0, %c0_0] : memref<1x128xf32, #tpu.memory_space<vmem>>, vector<1x128xf32>
    %c0_1 = arith.constant 0 : index
    %c0_2 = arith.constant 0 : index
    %1 = vector.load %arg1[%c0_1, %c0_2] : memref<8x128xf32, #tpu.memory_space<vmem>>, vector<8x128xf32>
    %c0_3 = arith.constant 0 : index
    %c0_4 = arith.constant 0 : index
    %2 = vector.load %arg3[%c0_3, %c0_4] : memref<128x128xf32, #tpu.memory_space<vmem>>, vector<128x128xf32>
    %cst = arith.constant dense<0.000000e+00> : vector<8x128xf32>
    %3 = tpu.matmul %1, %2, %cst {dimension_numbers = #tpu.dot_dimension_numbers<[1], [0], [0], [1], [0, 0, 1, 1], [], []>} : vector<8x128xf32>, vector<128x128xf32>, vector<8x128xf32> -> vector<8x128xf32>
    %4 = vector.broadcast %0 : vector<1x128xf32> to vector<8x128xf32>
    %5 = arith.addf %4, %3 : vector<8x128xf32>
    %c0_5 = arith.constant 0 : index
    %c0_6 = arith.constant 0 : index
    %6 = vector.load %arg0[%c0_5, %c0_6] : memref<8x4xf32, #tpu.memory_space<vmem>>, vector<8x4xf32>
    %7 = vector.extract_strided_slice %6 {offsets = [0, 0], sizes = [8, 1], strides = [1, 1]} : vector<8x4xf32> to vector<8x1xf32>
    %c0_7 = arith.constant 0 : index
    %c0_8 = arith.constant 0 : index
    %8 = vector.load %arg2[%c0_7, %c0_8] : memref<4x128xf32, #tpu.memory_space<vmem>>, vector<1x128xf32>
    %9 = vector.broadcast %7 : vector<8x1xf32> to vector<8x128xf32>
    %10 = vector.broadcast %8 : vector<1x128xf32> to vector<8x128xf32>
    %11 = arith.mulf %9, %10 : vector<8x128xf32>
    %12 = arith.addf %5, %11 : vector<8x128xf32>
    %13 = vector.extract_strided_slice %6 {offsets = [0, 1], sizes = [8, 1], strides = [1, 1]} : vector<8x4xf32> to vector<8x1xf32>
    %c1 = arith.constant 1 : index
    %c0_9 = arith.constant 0 : index
    %14 = vector.load %arg2[%c1, %c0_9] : memref<4x128xf32, #tpu.memory_space<vmem>>, vector<1x128xf32>
    %15 = vector.broadcast %13 : vector<8x1xf32> to vector<8x128xf32>
    %16 = vector.broadcast %14 : vector<1x128xf32> to vector<8x128xf32>
    %17 = arith.mulf %15, %16 : vector<8x128xf32>
    %18 = arith.addf %12, %17 : vector<8x128xf32>
    %19 = vector.extract_strided_slice %6 {offsets = [0, 2], sizes = [8, 1], strides = [1, 1]} : vector<8x4xf32> to vector<8x1xf32>
    %c2 = arith.constant 2 : index
    %c0_10 = arith.constant 0 : index
    %20 = vector.load %arg2[%c2, %c0_10] : memref<4x128xf32, #tpu.memory_space<vmem>>, vector<1x128xf32>
    %21 = vector.broadcast %19 : vector<8x1xf32> to vector<8x128xf32>
    %22 = vector.broadcast %20 : vector<1x128xf32> to vector<8x128xf32>
    %23 = arith.mulf %21, %22 : vector<8x128xf32>
    %24 = arith.addf %18, %23 : vector<8x128xf32>
    %25 = vector.extract_strided_slice %6 {offsets = [0, 3], sizes = [8, 1], strides = [1, 1]} : vector<8x4xf32> to vector<8x1xf32>
    %c3 = arith.constant 3 : index
    %c0_11 = arith.constant 0 : index
    %26 = vector.load %arg2[%c3, %c0_11] : memref<4x128xf32, #tpu.memory_space<vmem>>, vector<1x128xf32>
    %27 = vector.broadcast %25 : vector<8x1xf32> to vector<8x128xf32>
    %28 = vector.broadcast %26 : vector<1x128xf32> to vector<8x128xf32>
    %29 = arith.mulf %27, %28 : vector<8x128xf32>
    %30 = arith.addf %24, %29 : vector<8x128xf32>
    %31 = math.tanh %30 : vector<8x128xf32>
    %c0_12 = arith.constant 0 : index
    %c0_13 = arith.constant 0 : index
    %32 = vector.load %arg5[%c0_12, %c0_13] : memref<8x128xf32, #tpu.memory_space<vmem>>, vector<8x128xf32>
    tpu.vector_store %arg5[%c0_12, %c0_13], %31 {strides = array<i32>} : memref<8x128xf32, #tpu.memory_space<vmem>>, vector<8x128xf32>,
    return
  }
}

</mosaic_0001>

<llo_original>
// kernel: tpu_custom_call.1
$region0: #{tpu_custom_call.1}
  #allocation0 [shape = 'u32[]', space=smem, size = 0x4, offset = 0x4, fixed_abs, tag = 'smem constant byte address 0x4 - core index']
  #allocation1 [shape = 'u32[144,128]{1,0:T(1,128)}', space=vmem, size = 0x12000, scoped, tag = 'internal scratch']
  %s0 = inlined_call_operand.vmem [shape: f32[8,4], index: 0, kind: input, shape index: {}]
  %s1 = inlined_call_operand.vmem [shape: f32[8,128], index: 1, kind: input, shape index: {}]
  %s2 = inlined_call_operand.vmem [shape: f32[4,128], index: 2, kind: input, shape index: {}]
  %s3 = inlined_call_operand.hbm [shape: f32[128,128], index: 3, kind: input, shape index: {}]
  %s4 = inlined_call_operand.vmem [shape: f32[1,128], index: 4, kind: input, shape index: {}]
  %s5 = inlined_call_operand.hbm [shape: f32[8,128], index: 5, kind: output, shape index: {}]
  %s6 = sld [smem:[#allocation0]]
  $region34: #{tpu_custom_call.1} parent=0
    _
  %s8 = ssub.s32 1, %s6
  %s9 = scalar_select 0, %s8, %s6
  $region1: #{tpu_custom_call.1} parent=0
    #allocation2 [shape = 'u8[65536]{0}', space=vmem, size = 0x10000, scoped, tag = 'input window, operand 3, single buffered']
    #allocation3 [shape = 's32[1]{0}', space=sflag, size = 0x4, scoped, tag = 'scoped memory for tpu_custom_call.1']
    #allocation4 [shape = 's32[1]{0}', space=sflag, size = 0x4, scoped, tag = 'scoped memory for tpu_custom_call.1']
    #allocation5 [shape = 'u8[4096]{0}', space=vmem, size = 0x1000, scoped, tag = 'output window, operand 0, single buffered']
    %10 = vsyncpa [#allocation3], 0
    %11 = vsyncpa [#allocation4], 0
    // Predicated region
    $region2: #{tpu_custom_call.1} parent=1 // pred_check
      _
    $region3: #{tpu_custom_call.1} parent=1 // pred_check_branch
      %13 = sbr.rel (0) target = $region5
    $region4: #{tpu_custom_call.1} parent=1 // pred_region
      _
    $region5: #{tpu_custom_call.1} parent=1 // pred_fallthru
      _
    // Predicated region
    $region6: #{tpu_custom_call.1} parent=1 // pred_check
      _
    $region7: #{tpu_custom_call.1} parent=1 // pred_check_branch
      %15 = sbr.rel (0) target = $region9
    $region8: #{tpu_custom_call.1} parent=1 // pred_region
      _
    $region9: #{tpu_custom_call.1} parent=1 // pred_fallthru
      _
    // Predicated region
    $region10: #{tpu_custom_call.1} parent=1 // pred_check
      _
    $region11: #{tpu_custom_call.1} parent=1 // pred_check_branch
      %17 = sbr.rel (0) target = $region13
    $region12: #{tpu_custom_call.1} parent=1 // pred_region
      _
    $region13: #{tpu_custom_call.1} parent=1 // pred_fallthru
      _
    // Predicated region
    $region14: #{tpu_custom_call.1} parent=1 // pred_check
      _
    $region15: #{tpu_custom_call.1} parent=1 // pred_check_branch
      %19 = sbr.rel (0) target = $region17
    $region16: #{tpu_custom_call.1} parent=1 // pred_region
      %s21 = ssub.s32 2048, 2048
      %22 = vsyncadd [#allocation3], %s21
      %s23 = sshll.u32 [#allocation2], 4
      %s24 = int_to_ptr.vmem [resolvable:$true] %s23
      %29 = dma.hbm_to_vmem [thread:$0]  %s3, 2048, %s24, [#allocation3], 128, 128, 8
    $region17: #{tpu_custom_call.1} parent=1 // pred_fallthru
      _
    // Predicated region
    $region18: #{tpu_custom_call.1} parent=1 // pred_check
      _
    $region19: #{tpu_custom_call.1} parent=1 // pred_check_branch
      %31 = sbr.rel (0) target = $region21
    $region20: #{tpu_custom_call.1} parent=1 // pred_region
      _
    $region21: #{tpu_custom_call.1} parent=1 // pred_fallthru
      _
    // Predicated region
    $region22: #{tpu_custom_call.1} parent=1 // pred_check
      _
    $region23: #{tpu_custom_call.1} parent=1 // pred_check_branch
      %33 = sbr.rel (0) target = $region25
    $region24: #{tpu_custom_call.1} parent=1 // pred_region
      %34 = dma.done [#allocation3], 2048
    $region25: #{tpu_custom_call.1} parent=1 // pred_fallthru
      _
    %v35 = vld [vmem:[%s4] sm:$0x1]
    %v36 = vld [vmem:[%s1] sm:$0xff]
    %v37 = vld [vmem:[#allocation2] sm:$0xff]
    %v38 = vld [vmem:[#allocation2 + $0x8] sm:$0xff]
    %v39 = vld [vmem:[#allocation2 + $0x10] sm:$0xff]
    %v40 = vld [vmem:[#allocation2 + $0x18] sm:$0xff]
    %v41 = vld [vmem:[#allocation2 + $0x20] sm:$0xff]
    %v42 = vld [vmem:[#allocation2 + $0x28] sm:$0xff]
    %v43 = vld [vmem:[#allocation2 + $0x30] sm:$0xff]
    %v44 = vld [vmem:[#allocation2 + $0x38] sm:$0xff]
    %v45 = vld [vmem:[#allocation2 + $0x40] sm:$0xff]
    %v46 = vld [vmem:[#allocation2 + $0x48] sm:$0xff]
    %v47 = vld [vmem:[#allocation2 + $0x50] sm:$0xff]
    %v48 = vld [vmem:[#allocation2 + $0x58] sm:$0xff]
    %v49 = vld [vmem:[#allocation2 + $0x60] sm:$0xff]
    %v50 = vld [vmem:[#allocation2 + $0x68] sm:$0xff]
    %v51 = vld [vmem:[#allocation2 + $0x70] sm:$0xff]
    %v52 = vld [vmem:[#allocation2 + $0x78] sm:$0xff]
    %53 = vmatprep.subr.mxu0 0.0
    %54 = vmatpush1.msra.mxu0 %v52
    %55 = vmatprep.subr.mxu0 0.0
    %56 = vmatpush1.msra.mxu0 %v51
    %57 = vmatprep.subr.mxu0 0.0
    %58 = vmatpush1.msra.mxu0 %v50
    %59 = vmatprep.subr.mxu0 0.0
    %60 = vmatpush1.msra.mxu0 %v49
    %61 = vmatprep.subr.mxu0 0.0
    %62 = vmatpush1.msra.mxu0 %v48
    %63 = vmatprep.subr.mxu0 0.0
    %64 = vmatpush1.msra.mxu0 %v47
    %65 = vmatprep.subr.mxu0 0.0
    %66 = vmatpush1.msra.mxu0 %v46
    %67 = vmatprep.subr.mxu0 0.0
    %68 = vmatpush1.msra.mxu0 %v45
    %69 = vmatprep.subr.mxu0 0.0
    %70 = vmatpush1.msra.mxu0 %v44
    %71 = vmatprep.subr.mxu0 0.0
    %72 = vmatpush1.msra.mxu0 %v43
    %73 = vmatprep.subr.mxu0 0.0
    %74 = vmatpush1.msra.mxu0 %v42
    %75 = vmatprep.subr.mxu0 0.0
    %76 = vmatpush1.msra.mxu0 %v41
    %77 = vmatprep.subr.mxu0 0.0
    %78 = vmatpush1.msra.mxu0 %v40
    %79 = vmatprep.subr.mxu0 0.0
    %80 = vmatpush1.msra.mxu0 %v39
    %81 = vmatprep.subr.mxu0 0.0
    %82 = vmatpush1.msra.mxu0 %v38
    %83 = vmatprep.subr.mxu0 0.0
    %84 = vmatpush1.msra.mxu0 %v37
    %85 = vmatprep.subr.mxu0 0.0
    %86 = vmatpush2.msra.mxu0 0.0
    %87 = vmatprep.subr.mxu0 0.0
    %88 = vmatpush2.msra.mxu0 0.0
    %89 = vmatprep.subr.mxu0 0.0
    %90 = vmatpush2.msra.mxu0 0.0
    %91 = vmatprep.subr.mxu0 0.0
    %92 = vmatpush2.msra.mxu0 0.0
    %93 = vmatprep.subr.mxu0 0.0
    %94 = vmatpush2.msra.mxu0 0.0
    %95 = vmatprep.subr.mxu0 0.0
    %96 = vmatpush2.msra.mxu0 0.0
    %97 = vmatprep.subr.mxu0 0.0
    %98 = vmatpush2.msra.mxu0 0.0
    %99 = vmatprep.subr.mxu0 0.0
    %100 = vmatpush2.msra.mxu0 0.0
    %101 = vmatprep.subr.mxu0 0.0
    %102 = vmatpush2.msra.mxu0 0.0
    %103 = vmatprep.subr.mxu0 0.0
    %104 = vmatpush2.msra.mxu0 0.0
    %105 = vmatprep.subr.mxu0 0.0
    %106 = vmatpush2.msra.mxu0 0.0
    %107 = vmatprep.subr.mxu0 0.0
    %108 = vmatpush2.msra.mxu0 0.0
    %109 = vmatprep.subr.mxu0 0.0
    %110 = vmatpush2.msra.mxu0 0.0
    %111 = vmatprep.subr.mxu0 0.0
    %112 = vmatpush2.msra.mxu0 0.0
    %113 = vmatprep.subr.mxu0 0.0
    %114 = vmatpush2.msra.mxu0 0.0
    %115 = vmatprep.subr.mxu0 0.0
    %116 = vmatpush2.msra.mxu0 0.0
    %117 = vmatprep.mubr.f32.mxu0 0.0
    %118 = vmatmul.mubr.f32.gmra.mxu0 %v36
    %v119 = vpop.f32.mrf.mxu0
    %v120 = vadd.f32 0.0, %v119
    %v121 = vpop.f32.mrf.mxu0
    %122 = vdwg.mxu0
    %v124 = vlaneseq
    %v125 = vshrl.u32 %v124, 7
    %v126 = vsub.s32 0, %v125
    %v127 = vrot.slane %v35, %v126
    %v129 = vadd.f32 %v127, %v120
    %v130 = vld [vmem:[%s0] sm:$0xff]
    %v131 = vld [vmem:[%s2] sm:$0x1]
    %133 = vset.pattern.permute.xlu0 0
    %134 = vperm.xlu0 %133, %v130
    %v135 = vpop.permute.xlu0 %134
    %v137 = vlaneseq
    %v138 = vshrl.u32 %v137, 7
    %v139 = vsub.s32 0, %v138
    %v140 = vrot.slane %v131, %v139
    %v141 = vmul.f32 %v135, %v140
    %v142 = vadd.f32 %v129, %v141
    %v143 = vld [vmem:[%s2 + $0x1] sm:$0x1]
    %144 = vset.pattern.permute.xlu0 1
    %145 = vperm.xlu0 %144, %v130
    %v146 = vpop.permute.xlu0 %145
    %v148 = vlaneseq
    %v149 = vshrl.u32 %v148, 7
    %v150 = vsub.s32 0, %v149
    %v151 = vrot.slane %v143, %v150
    %v152 = vmul.f32 %v146, %v151
    %v153 = vadd.f32 %v142, %v152
    %v154 = vld [vmem:[%s2 + $0x2] sm:$0x1]
    %155 = vset.pattern.permute.xlu0 2
    %156 = vperm.xlu0 %155, %v130
    %v157 = vpop.permute.xlu0 %156
    %v159 = vlaneseq
    %v160 = vshrl.u32 %v159, 7
    %v161 = vsub.s32 0, %v160
    %v162 = vrot.slane %v154, %v161
    %v163 = vmul.f32 %v157, %v162
    %v164 = vadd.f32 %v153, %v163
    %v165 = vld [vmem:[%s2 + $0x3] sm:$0x1]
    %166 = vset.pattern.permute.xlu0 3
    %167 = vperm.xlu0 %166, %v130
    %v168 = vpop.permute.xlu0 %167
    %v170 = vlaneseq
    %v171 = vshrl.u32 %v170, 7
    %v172 = vsub.s32 0, %v171
    %v173 = vrot.slane %v165, %v172
    %v174 = vmul.f32 %v168, %v173
    %v175 = vadd.f32 %v164, %v174
    %v176 = vtanh.pop %v175
    %177 = vst [vmem:[#allocation5] sm:$0xff] %v176
    // Predicated region
    $region26: #{tpu_custom_call.1} parent=1 // pred_check
      _
    $region27: #{tpu_custom_call.1} parent=1 // pred_check_branch
      %179 = sbr.rel (0) target = $region29
    $region28: #{tpu_custom_call.1} parent=1 // pred_region
      %s181 = ssub.s32 128, 128
      %182 = vsyncadd [#allocation4], %s181
      %s184 = sshll.u32 [#allocation5], 4
      %s185 = int_to_ptr.vmem [resolvable:$true] %s184
      %187 = dma.vmem_to_hbm [thread:$0]  %s185, 128, %s5, [#allocation4]
    $region29: #{tpu_custom_call.1} parent=1 // pred_fallthru
      _
    // Predicated region
    $region30: #{tpu_custom_call.1} parent=1 // pred_check
      _
    $region31: #{tpu_custom_call.1} parent=1 // pred_check_branch
      %189 = sbr.rel (0) target = $region33
    $region32: #{tpu_custom_call.1} parent=1 // pred_region
      %190 = dma.done [#allocation4], 128
    $region33: #{tpu_custom_call.1} parent=1 // pred_fallthru
      _
    %191 = vsyncpa [#allocation3], 1
    %192 = vsyncpa [#allocation4], 1

</llo_original>
